<compile_context>
chip_gen: v6e
topology: v6e:2x2x1
jax: 0.10.0
libtpu: 0.0.40
codegen_flags: <defaults>
</compile_context>

<pallas_src>
import jax
import jax.numpy as jnp
from jax.experimental import pallas as pl
from jax.experimental.pallas import tpu as pltpu


def _round_up(n, m):
    return ((n + m - 1) // m) * m


def discriminator_kernel(x_ref, w1_ref, b1_ref, w2_ref, b2_ref, w3_ref, b3_ref, o_ref):
    act_dtype = x_ref.dtype  # bf16 (or f32) operands fed to the MXU
    x = x_ref[...]

    # fc1 + ReLU  (bf16 x bf16 -> f32 accumulate, elementwise in f32)
    h1 = jnp.dot(x, w1_ref[...], preferred_element_type=jnp.float32) + b1_ref[...]
    # Cast back to the MXU operand dtype right away: halves the [TM, H] footprint.
    h1 = jnp.maximum(h1, 0.0).astype(act_dtype)

    # fc2 + ReLU
    h2 = jnp.dot(h1, w2_ref[...], preferred_element_type=jnp.float32) + b2_ref[...]
    h2 = jnp.maximum(h2, 0.0)

    # fc3: single output unit -> elementwise multiply with the w3 row + lane reduce
    # (XLU), no padded [TM, 128] slab and no MXU call for a width-1 matmul.
    logits = jnp.sum(h2 * w3_ref[...], axis=1, keepdims=True) + b3_ref[...]  # [TM, 1]

    # Sigmoid on just TM values: exp -> EUP, approx reciprocal -> EUP.
    o_ref[...] = pl.reciprocal(1.0 + jnp.exp(-logits), approx=True).astype(o_ref.dtype)


def discriminator_forward(x, w1, b1, w2, b2, w3, b3, *, tile_m=1024):
    """x: [B, K]; w1: [K, H]; w2: [H, H]; w3: [H, 1]; b1/b2: [1, H]; b3: [1, 1]."""
    B, K = x.shape
    H = w1.shape[1]
    assert w1.shape == (K, H) and w2.shape == (H, H) and w3.shape == (H, 1)
    assert b1.shape == (1, H) and b2.shape == (1, H) and b3.shape == (1, 1)

    # fc3 weight as a lane-dense row so the kernel can do multiply + lane-reduce.
    w3_row = w3.reshape(1, H)

    # Batch tile: sublane-aligned, as large as practical (per-grid-step overhead
    # ~0.35us). If the whole (large) batch would land in one tile, split in two so
    # the "parallel" grid axis can shard across v7x's 2 TensorCores.
    B8 = _round_up(B, 8)
    TM = min(tile_m, B8)
    if TM == B8 and B8 >= 1024:
        TM = _round_up(B8 // 2, 8)
    grid_m = pl.cdiv(B, TM)

    const = lambda i: (0, 0)  # weights/biases: same block every step -> VMEM-resident
    # TODO(synk): for large hidden sizes, mark the constant specs below with
    # pipeline_mode=pl.Buffered(1) (single resident buffer) and/or add a reduction
    # grid axis over fc2's contraction dim to respect v7x's 64 MiB VMEM.

    out = pl.pallas_call(
        discriminator_kernel,
        out_shape=jax.ShapeDtypeStruct((B, 1), jnp.float32),
        grid_spec=pltpu.PrefetchScalarGridSpec(
            num_scalar_prefetch=0,
            grid=(grid_m,),
            in_specs=[
                pl.BlockSpec((TM, K), lambda i: (i, 0)),  # x tile (pipelined)
                pl.BlockSpec((K, H), const),              # w1
                pl.BlockSpec((1, H), const),              # b1 (f32)
                pl.BlockSpec((H, H), const),              # w2
                pl.BlockSpec((1, H), const),              # b2 (f32)
                pl.BlockSpec((1, H), const),              # w3 row
                pl.BlockSpec((1, 1), const),              # b3 (f32)
            ],
            out_specs=pl.BlockSpec((TM, 1), lambda i: (i, 0)),  # compact [B, 1] output
        ),
        compiler_params=pltpu.CompilerParams(
            dimension_semantics=("parallel",),  # shards batch tiles across v7x's 2 TCs
        ),
    )(x, w1, b1, w2, b2, w3_row, b3)

    return out


def init_params(key, input_size, hidden_size):
    # Mimics torch.nn.Linear default init: U[-1/sqrt(fan_in), 1/sqrt(fan_in)].
    ks = jax.random.split(key, 6)

    def linear(kw, kb, fan_in, fan_out):
        bound = 1.0 / jnp.sqrt(fan_in)
        w = jax.random.uniform(kw, (fan_in, fan_out), jnp.float32, -bound, bound)
        b = jax.random.uniform(kb, (1, fan_out), jnp.float32, -bound, bound)
        return w, b

    w1, b1 = linear(ks[0], ks[1], input_size, hidden_size)
    w2, b2 = linear(ks[2], ks[3], hidden_size, hidden_size)
    w3, b3 = linear(ks[4], ks[5], hidden_size, 1)
    # fc4 (hidden_size -> input_size) is defined in the module but unused in forward(); omitted.
    return w1, b1, w2, b2, w3, b3


def reference_forward(x, w1, b1, w2, b2, w3, b3):
    # Mirrors the kernel's dtype/cast sequence (bf16 MXU operands for fc1/fc2,
    # f32 accumulate/elementwise, f32 fc3 reduce over bf16-quantized w3).
    h1 = jnp.maximum(jnp.dot(x, w1, preferred_element_type=jnp.float32) + b1, 0.0)
    h2 = jnp.maximum(jnp.dot(h1.astype(x.dtype), w2,
                             preferred_element_type=jnp.float32) + b2, 0.0)
    logits = jnp.dot(h2, w3.astype(jnp.float32)) + b3
    return 1.0 / (1.0 + jnp.exp(-logits))


if __name__ == "__main__":
    # NOTE: these sizes are for correctness only; perf conclusions require B >= a few
    # thousand (at B=8 / grid=1 everything is fixed launch/DMA overhead).
    input_size = 64
    hidden_size = 32
    batch = 8

    key = jax.random.PRNGKey(0)
    kx, kp = jax.random.split(key)
    x = jax.random.normal(kx, (batch, input_size), jnp.float32)
    w1, b1, w2, b2, w3, b3 = init_params(kp, input_size, hidden_size)

    # bf16 MXU operands (biases stay f32); reference uses the same bf16 values.
    x_bf = x.astype(jnp.bfloat16)
    w1_bf, w2_bf, w3_bf = (w.astype(jnp.bfloat16) for w in (w1, w2, w3))

    out = discriminator_forward(x_bf, w1_bf, b1, w2_bf, b2, w3_bf, b3)
    out = jax.block_until_ready(out)

    ref = reference_forward(x_bf, w1_bf, b1, w2_bf, b2, w3_bf, b3)
    assert out.shape == (batch, 1)
    assert jnp.allclose(out, ref, atol=2e-3, rtol=2e-3), "mismatch vs reference"

    print("KERNEL_OK")
</pallas_src>

<mosaic_0001>
module attributes {stable_mosaic.version = 11 : i64} {
  func.func @discriminator_kernel(%arg0: i32, %arg1: memref<8x64xbf16, #tpu.memory_space<vmem>>, %arg2: memref<64x32xbf16, #tpu.memory_space<vmem>>, %arg3: memref<1x32xf32, #tpu.memory_space<vmem>>, %arg4: memref<32x32xbf16, #tpu.memory_space<vmem>>, %arg5: memref<1x32xf32, #tpu.memory_space<vmem>>, %arg6: memref<1x32xbf16, #tpu.memory_space<vmem>>, %arg7: memref<1x1xf32, #tpu.memory_space<vmem>>, %arg8: memref<8x1xf32, #tpu.memory_space<vmem>>) attributes {dimension_semantics = [#tpu.dimension_semantics<parallel>], iteration_bounds = array<i64: 1>, scalar_prefetch = 0 : i64, scratch_operands = 0 : i64, tpu.core_type = #tpu.core_type<tc>, window_params = [{transform_indices = @transform_0, window_bounds = array<i64: 8, 64>}, {pipeline_mode = #tpu.pipeline_mode<synchronous>, transform_indices = @transform_1, window_bounds = array<i64: 64, 32>}, {pipeline_mode = #tpu.pipeline_mode<synchronous>, transform_indices = @transform_2, window_bounds = array<i64: 1, 32>}, {pipeline_mode = #tpu.pipeline_mode<synchronous>, transform_indices = @transform_3, window_bounds = array<i64: 32, 32>}, {pipeline_mode = #tpu.pipeline_mode<synchronous>, transform_indices = @transform_4, window_bounds = array<i64: 1, 32>}, {pipeline_mode = #tpu.pipeline_mode<synchronous>, transform_indices = @transform_5, window_bounds = array<i64: 1, 32>}, {pipeline_mode = #tpu.pipeline_mode<synchronous>, transform_indices = @transform_6, window_bounds = array<i64: 1, 1>}, {transform_indices = @transform_7, window_bounds = array<i64: 8, 1>}]} {
    %c0 = arith.constant 0 : index
    %c0_0 = arith.constant 0 : index
    %0 = vector.load %arg1[%c0, %c0_0] : memref<8x64xbf16, #tpu.memory_space<vmem>>, vector<8x64xbf16>
    %c0_1 = arith.constant 0 : index
    %c0_2 = arith.constant 0 : index
    %1 = vector.load %arg2[%c0_1, %c0_2] : memref<64x32xbf16, #tpu.memory_space<vmem>>, vector<64x32xbf16>
    %cst = arith.constant dense<0.000000e+00> : vector<8x32xf32>
    %2 = tpu.matmul %0, %1, %cst {dimension_numbers = #tpu.dot_dimension_numbers<[1], [0], [0], [1], [0, 0, 1, 1], [], []>} : vector<8x64xbf16>, vector<64x32xbf16>, vector<8x32xf32> -> vector<8x32xf32>
    %c0_3 = arith.constant 0 : index
    %c0_4 = arith.constant 0 : index
    %3 = vector.load %arg3[%c0_3, %c0_4] : memref<1x32xf32, #tpu.memory_space<vmem>>, vector<1x32xf32>
    %4 = vector.broadcast %3 : vector<1x32xf32> to vector<8x32xf32>
    %5 = arith.addf %2, %4 : vector<8x32xf32>
    %cst_5 = arith.constant 0.000000e+00 : f32
    %6 = vector.broadcast %cst_5 : f32 to vector<8x32xf32>
    %7 = arith.maximumf %5, %6 : vector<8x32xf32>
    %8 = arith.truncf %7 : vector<8x32xf32> to vector<8x32xbf16>
    %c0_6 = arith.constant 0 : index
    %c0_7 = arith.constant 0 : index
    %9 = vector.load %arg4[%c0_6, %c0_7] : memref<32x32xbf16, #tpu.memory_space<vmem>>, vector<32x32xbf16>
    %cst_8 = arith.constant dense<0.000000e+00> : vector<8x32xf32>
    %10 = tpu.matmul %8, %9, %cst_8 {dimension_numbers = #tpu.dot_dimension_numbers<[1], [0], [0], [1], [0, 0, 1, 1], [], []>} : vector<8x32xbf16>, vector<32x32xbf16>, vector<8x32xf32> -> vector<8x32xf32>
    %c0_9 = arith.constant 0 : index
    %c0_10 = arith.constant 0 : index
    %11 = vector.load %arg5[%c0_9, %c0_10] : memref<1x32xf32, #tpu.memory_space<vmem>>, vector<1x32xf32>
    %12 = vector.broadcast %11 : vector<1x32xf32> to vector<8x32xf32>
    %13 = arith.addf %10, %12 : vector<8x32xf32>
    %cst_11 = arith.constant 0.000000e+00 : f32
    %14 = vector.broadcast %cst_11 : f32 to vector<8x32xf32>
    %15 = arith.maximumf %13, %14 : vector<8x32xf32>
    %c0_12 = arith.constant 0 : index
    %c0_13 = arith.constant 0 : index
    %16 = vector.load %arg6[%c0_12, %c0_13] : memref<1x32xbf16, #tpu.memory_space<vmem>>, vector<1x32xbf16>
    %17 = arith.extf %16 : vector<1x32xbf16> to vector<1x32xf32>
    %18 = vector.broadcast %17 : vector<1x32xf32> to vector<8x32xf32>
    %19 = arith.mulf %15, %18 : vector<8x32xf32>
    %cst_14 = arith.constant dense<0.000000e+00> : vector<8xf32>
    %20 = vector.multi_reduction <add>, %19, %cst_14 [1] : vector<8x32xf32> to vector<8xf32>
    %21 = vector.shape_cast %20 : vector<8xf32> to vector<8x1xf32>
    %c0_15 = arith.constant 0 : index
    %c0_16 = arith.constant 0 : index
    %22 = vector.load %arg7[%c0_15, %c0_16] : memref<1x1xf32, #tpu.memory_space<vmem>>, vector<1x1xf32>
    %23 = vector.broadcast %22 : vector<1x1xf32> to vector<8x1xf32>
    %24 = arith.addf %21, %23 : vector<8x1xf32>
    %cst_17 = arith.constant 0.000000e+00 : f32
    %25 = vector.broadcast %cst_17 : f32 to vector<8x1xf32>
    %26 = arith.subf %25, %24 : vector<8x1xf32>
    %27 = math.exp %26 : vector<8x1xf32>
    %cst_18 = arith.constant 1.000000e+00 : f32
    %28 = vector.broadcast %cst_18 : f32 to vector<8x1xf32>
    %29 = arith.addf %28, %27 : vector<8x1xf32>
    %30 = tpu.reciprocal %29 {approx = true} : vector<8x1xf32> -> vector<8x1xf32>
    %c0_19 = arith.constant 0 : index
    %c0_20 = arith.constant 0 : index
    %31 = vector.load %arg8[%c0_19, %c0_20] : memref<8x1xf32, #tpu.memory_space<vmem>>, vector<8x1xf32>
    tpu.vector_store %arg8[%c0_19, %c0_20], %30 {strides = array<i32>} : memref<8x1xf32, #tpu.memory_space<vmem>>, vector<8x1xf32>,
    return
  }
  func.func @transform_0(%arg0: i32) -> (i32, i32) {
    %c0_i32 = arith.constant 0 : i32
    %c0_i32_0 = arith.constant 0 : i32
    return %arg0, %c0_i32 : i32, i32
  }
  func.func @transform_1(%arg0: i32) -> (i32, i32) {
    %c0_i32 = arith.constant 0 : i32
    %c0_i32_0 = arith.constant 0 : i32
    %c0_i32_1 = arith.constant 0 : i32
    return %c0_i32, %c0_i32_0 : i32, i32
  }
  func.func @transform_2(%arg0: i32) -> (i32, i32) {
    %c0_i32 = arith.constant 0 : i32
    %c0_i32_0 = arith.constant 0 : i32
    %c0_i32_1 = arith.constant 0 : i32
    return %c0_i32, %c0_i32_0 : i32, i32
  }
  func.func @transform_3(%arg0: i32) -> (i32, i32) {
    %c0_i32 = arith.constant 0 : i32
    %c0_i32_0 = arith.constant 0 : i32
    %c0_i32_1 = arith.constant 0 : i32
    return %c0_i32, %c0_i32_0 : i32, i32
  }
  func.func @transform_4(%arg0: i32) -> (i32, i32) {
    %c0_i32 = arith.constant 0 : i32
    %c0_i32_0 = arith.constant 0 : i32
    %c0_i32_1 = arith.constant 0 : i32
    return %c0_i32, %c0_i32_0 : i32, i32
  }
  func.func @transform_5(%arg0: i32) -> (i32, i32) {
    %c0_i32 = arith.constant 0 : i32
    %c0_i32_0 = arith.constant 0 : i32
    %c0_i32_1 = arith.constant 0 : i32
    return %c0_i32, %c0_i32_0 : i32, i32
  }
  func.func @transform_6(%arg0: i32) -> (i32, i32) {
    %c0_i32 = arith.constant 0 : i32
    %c0_i32_0 = arith.constant 0 : i32
    %c0_i32_1 = arith.constant 0 : i32
    return %c0_i32, %c0_i32_0 : i32, i32
  }
  func.func @transform_7(%arg0: i32) -> (i32, i32) {
    %c0_i32 = arith.constant 0 : i32
    %c0_i32_0 = arith.constant 0 : i32
    return %arg0, %c0_i32 : i32, i32
  }
}

</mosaic_0001>

<llo_original>
// kernel: tpu_custom_call.1
$region0: #{tpu_custom_call.1}
  #allocation0 [shape = 'u32[]', space=smem, size = 0x4, offset = 0x4, fixed_abs, tag = 'smem constant byte address 0x4 - core index']
  #allocation1 [shape = 'u32[144,128]{1,0:T(1,128)}', space=vmem, size = 0x12000, scoped, tag = 'internal scratch']
  #allocation2 [shape = 'f32[1,1]{1,0:T(1,128)S(1)}', space=vmem, size = 0x200, scoped, tag = 'scoped memory for tpu_custom_call.1']
  %s0 = inlined_call_operand.vmem [shape: bf16[8,64], index: 0, kind: input, shape index: {}]
  %s1 = inlined_call_operand.vmem [shape: bf16[64,32], index: 1, kind: input, shape index: {}]
  %s2 = inlined_call_operand.vmem [shape: f32[1,32], index: 2, kind: input, shape index: {}]
  %s3 = inlined_call_operand.vmem [shape: bf16[32,32], index: 3, kind: input, shape index: {}]
  %s4 = inlined_call_operand.vmem [shape: f32[1,32], index: 4, kind: input, shape index: {}]
  %s5 = inlined_call_operand.vmem [shape: bf16[1,32], index: 5, kind: input, shape index: {}]
  %s6 = inlined_call_operand.<no memory space> [shape: f32[1,1], index: 6, kind: input, shape index: {}]
  %s7 = inlined_call_operand.vmem [shape: f32[8,1], index: 7, kind: output, shape index: {}]
  %s8 = sld [smem:[#allocation0]]
  $region38: #{tpu_custom_call.1} parent=0
    _
  %s10 = ssub.s32 1, %s8
  %s11 = scalar_select 0, %s10, %s8
  %v12 = vstv %s6
  %13 = vst [vmem:[#allocation2] sm:$0x1] %v12
  // Predicated region
  $region2: #{tpu_custom_call.1} parent=0 // pred_check
    _
  $region3: #{tpu_custom_call.1} parent=0 // pred_check_branch
    %15 = sbr.rel (0) target = $region5
  $region4: #{tpu_custom_call.1} parent=0 // pred_region
    _
  $region5: #{tpu_custom_call.1} parent=0 // pred_fallthru
    _
  // Predicated region
  $region6: #{tpu_custom_call.1} parent=0 // pred_check
    _
  $region7: #{tpu_custom_call.1} parent=0 // pred_check_branch
    %17 = sbr.rel (0) target = $region9
  $region8: #{tpu_custom_call.1} parent=0 // pred_region
    _
  $region9: #{tpu_custom_call.1} parent=0 // pred_fallthru
    _
  // Predicated region
  $region10: #{tpu_custom_call.1} parent=0 // pred_check
    _
  $region11: #{tpu_custom_call.1} parent=0 // pred_check_branch
    %19 = sbr.rel (0) target = $region13
  $region12: #{tpu_custom_call.1} parent=0 // pred_region
    _
  $region13: #{tpu_custom_call.1} parent=0 // pred_fallthru
    _
  // Predicated region
  $region14: #{tpu_custom_call.1} parent=0 // pred_check
    _
  $region15: #{tpu_custom_call.1} parent=0 // pred_check_branch
    %21 = sbr.rel (0) target = $region17
  $region16: #{tpu_custom_call.1} parent=0 // pred_region
    _
  $region17: #{tpu_custom_call.1} parent=0 // pred_fallthru
    _
  // Predicated region
  $region18: #{tpu_custom_call.1} parent=0 // pred_check
    _
  $region19: #{tpu_custom_call.1} parent=0 // pred_check_branch
    %23 = sbr.rel (0) target = $region21
  $region20: #{tpu_custom_call.1} parent=0 // pred_region
    _
  $region21: #{tpu_custom_call.1} parent=0 // pred_fallthru
    _
  // Predicated region
  $region22: #{tpu_custom_call.1} parent=0 // pred_check
    _
  $region23: #{tpu_custom_call.1} parent=0 // pred_check_branch
    %25 = sbr.rel (0) target = $region25
  $region24: #{tpu_custom_call.1} parent=0 // pred_region
    _
  $region25: #{tpu_custom_call.1} parent=0 // pred_fallthru
    _
  // Predicated region
  $region26: #{tpu_custom_call.1} parent=0 // pred_check
    _
  $region27: #{tpu_custom_call.1} parent=0 // pred_check_branch
    %27 = sbr.rel (0) target = $region29
  $region28: #{tpu_custom_call.1} parent=0 // pred_region
    _
  $region29: #{tpu_custom_call.1} parent=0 // pred_fallthru
    _
  %v29 = vld [vmem:[%s0] sm:$0xf]
  %v30 = vld [vmem:[%s1] sm:$0xf]
  %v31 = vld [vmem:[%s1 + $0x4] sm:$0xf]
  %v32 = vld [vmem:[%s1 + $0x8] sm:$0xf]
  %v33 = vld [vmem:[%s1 + $0xc] sm:$0xf]
  %v34 = vld [vmem:[%s1 + $0x10] sm:$0xf]
  %v35 = vld [vmem:[%s1 + $0x14] sm:$0xf]
  %v36 = vld [vmem:[%s1 + $0x18] sm:$0xf]
  %v37 = vld [vmem:[%s1 + $0x1c] sm:$0xf]
  %v38 = vld [vmem:[%s2] sm:$0x1]
  %v40 = vlaneseq
  %v41 = vshrl.u32 %v40, 7
  %v42 = vsub.s32 0, %v41
  %v43 = vrot.slane %v38, %v42
  %v53 = vunpack.c.l.b16 %v30
  %v54 = vunpack.c.l.b16 %v31
  %v55 = vunpack.c.l.b16 %v32
  %v56 = vunpack.c.l.b16 %v33
  %v57 = vunpack.c.l.b16 %v34
  %v58 = vunpack.c.l.b16 %v35
  %v59 = vunpack.c.l.b16 %v36
  %v60 = vunpack.c.l.b16 %v37
  %v61 = vpack.c.b16 %v54, %v53
  %v62 = vpack.c.b16 %v56, %v55
  %v63 = vpack.c.b16 %v58, %v57
  %v64 = vpack.c.b16 %v60, %v59
  %vm69 = vcmask 523264
  %v71 = vsel %vm69, %v29, 0
  %73 = vmatprep.subr.bf16.mxu0 0
  %74 = vmatpush1.bf16.msra.mxu0 0
  %75 = vmatprep.subr.bf16.mxu0 0
  %76 = vmatpush1.bf16.msra.mxu0 0
  %77 = vmatprep.subr.bf16.mxu0 0
  %78 = vmatpush1.bf16.msra.mxu0 0
  %79 = vmatprep.subr.bf16.mxu0 0
  %80 = vmatpush1.bf16.msra.mxu0 0
  %81 = vmatprep.subr.bf16.mxu0 0
  %82 = vmatpush1.bf16.msra.mxu0 %v64
  %83 = vmatprep.subr.bf16.mxu0 0
  %84 = vmatpush1.bf16.msra.mxu0 %v63
  %85 = vmatprep.subr.bf16.mxu0 0
  %86 = vmatpush1.bf16.msra.mxu0 %v62
  %87 = vmatprep.subr.bf16.mxu0 0
  %88 = vmatpush1.bf16.msra.mxu0 %v61
  %89 = vmatprep.subr.bf16.mxu0 0
  %90 = vmatpush2.bf16.msra.mxu0 0
  %91 = vmatprep.subr.bf16.mxu0 0
  %92 = vmatpush2.bf16.msra.mxu0 0
  %93 = vmatprep.subr.bf16.mxu0 0
  %94 = vmatpush2.bf16.msra.mxu0 0
  %95 = vmatprep.subr.bf16.mxu0 0
  %96 = vmatpush2.bf16.msra.mxu0 0
  %97 = vmatprep.subr.bf16.mxu0 0
  %98 = vmatpush2.bf16.msra.mxu0 0
  %99 = vmatprep.subr.bf16.mxu0 0
  %100 = vmatpush2.bf16.msra.mxu0 0
  %101 = vmatprep.subr.bf16.mxu0 0
  %102 = vmatpush2.bf16.msra.mxu0 0
  %103 = vmatprep.subr.bf16.mxu0 0
  %104 = vmatpush2.bf16.msra.mxu0 0
  %105 = vmatprep.mubr.bf16.mxu0 0
  %106 = vmatmul.mubr.bf16.gmra.mxu0 %v71
  %v107 = vpop.f32.mrf.mxu0
  %v108 = vadd.f32 %v43, %v107
  %v109 = vpop.f32.mrf.mxu0
  %v110 = vpop.f32.mrf.mxu0
  %v111 = vpop.f32.mrf.mxu0
  %112 = vdwg.mxu0
  %v113 = vmax.f32 %v108, 0.0
  %v114 = vpack.c.bf16 %v113, %v113
  %v115 = vld [vmem:[%s3] sm:$0xf]
  %v116 = vld [vmem:[%s3 + $0x4] sm:$0xf]
  %v117 = vld [vmem:[%s3 + $0x8] sm:$0xf]
  %v118 = vld [vmem:[%s3 + $0xc] sm:$0xf]
  %v119 = vld [vmem:[%s4] sm:$0x1]
  %v121 = vlaneseq
  %v122 = vshrl.u32 %v121, 7
  %v123 = vsub.s32 0, %v122
  %v124 = vrot.slane %v119, %v123
  %v130 = vunpack.c.l.b16 %v115
  %v131 = vunpack.c.l.b16 %v116
  %v132 = vunpack.c.l.b16 %v117
  %v133 = vunpack.c.l.b16 %v118
  %v134 = vpack.c.b16 %v131, %v130
  %v135 = vpack.c.b16 %v133, %v132
  %vm138 = vcmask 261120
  %v140 = vsel %vm138, %v114, 0
  %142 = vmatprep.subr.bf16.mxu0 0
  %143 = vmatpush1.bf16.msra.mxu0 0
  %144 = vmatprep.subr.bf16.mxu0 0
  %145 = vmatpush1.bf16.msra.mxu0 0
  %146 = vmatprep.subr.bf16.mxu0 0
  %147 = vmatpush1.bf16.msra.mxu0 0
  %148 = vmatprep.subr.bf16.mxu0 0
  %149 = vmatpush1.bf16.msra.mxu0 0
  %150 = vmatprep.subr.bf16.mxu0 0
  %151 = vmatpush1.bf16.msra.mxu0 0
  %152 = vmatprep.subr.bf16.mxu0 0
  %153 = vmatpush1.bf16.msra.mxu0 0
  %154 = vmatprep.subr.bf16.mxu0 0
  %155 = vmatpush1.bf16.msra.mxu0 %v135
  %156 = vmatprep.subr.bf16.mxu0 0
  %157 = vmatpush1.bf16.msra.mxu0 %v134
  %158 = vmatprep.subr.bf16.mxu0 0
  %159 = vmatpush2.bf16.msra.mxu0 0
  %160 = vmatprep.subr.bf16.mxu0 0
  %161 = vmatpush2.bf16.msra.mxu0 0
  %162 = vmatprep.subr.bf16.mxu0 0
  %163 = vmatpush2.bf16.msra.mxu0 0
  %164 = vmatprep.subr.bf16.mxu0 0
  %165 = vmatpush2.bf16.msra.mxu0 0
  %166 = vmatprep.subr.bf16.mxu0 0
  %167 = vmatpush2.bf16.msra.mxu0 0
  %168 = vmatprep.subr.bf16.mxu0 0
  %169 = vmatpush2.bf16.msra.mxu0 0
  %170 = vmatprep.subr.bf16.mxu0 0
  %171 = vmatpush2.bf16.msra.mxu0 0
  %172 = vmatprep.subr.bf16.mxu0 0
  %173 = vmatpush2.bf16.msra.mxu0 0
  %174 = vmatprep.mubr.bf16.mxu0 0
  %175 = vmatmul.mubr.bf16.gmra.mxu0 %v140
  %v176 = vpop.f32.mrf.mxu0
  %v177 = vadd.f32 %v124, %v176
  %v178 = vpop.f32.mrf.mxu0
  %v179 = vpop.f32.mrf.mxu0
  %v180 = vpop.f32.mrf.mxu0
  %181 = vdwg.mxu0
  %v182 = vmax.f32 %v177, 0.0
  %v183 = vld [vmem:[%s5] sm:$0x1]
  %v184 = vunpack.c.l.bf16 %v183
  %v185 = vlaneseq
  %v186 = vshrl.u32 %v185, 7
  %v187 = vsub.s32 0, %v186
  %v188 = vrot.slane %v184, %v187
  %v189 = vmul.f32 %v182, %v188
  %v190 = vsel %vm138, %v189, 0.0
  %191 = vadd.xlane.f32.xlu0 %v190
  %v192 = vpop.xlane.xlu0 %191
  %v193 = vld [vmem:[#allocation2] sm:$0x1]
  %v195 = vlaneseq
  %v196 = vshrl.u32 %v195, 7
  %v197 = vsub.s32 0, %v196
  %v198 = vrot.slane %v193, %v197
  %v200 = vadd.f32 %v192, %v198
  %v201 = vsub.f32 0.0, %v200
  %v202 = vmul.f32 %v201, 1.442695
  %v203 = vpow.pop %v202
  %v204 = vadd.f32 %v203, 1.0
  %v205 = vrcp.pop %v204
  %vm206 = vcmask 7168
  %207 = vst.msk [vmem:[%s7] sm:$0xff] %vm206, %v205
  // Predicated region
  $region30: #{tpu_custom_call.1} parent=0 // pred_check
    _
  $region31: #{tpu_custom_call.1} parent=0 // pred_check_branch
    %209 = sbr.rel (0) target = $region33
  $region32: #{tpu_custom_call.1} parent=0 // pred_region
    _
  $region33: #{tpu_custom_call.1} parent=0 // pred_fallthru
    _
  // Predicated region
  $region34: #{tpu_custom_call.1} parent=0 // pred_check
    _
  $region35: #{tpu_custom_call.1} parent=0 // pred_check_branch
    %211 = sbr.rel (0) target = $region37
  $region36: #{tpu_custom_call.1} parent=0 // pred_region
    _
  $region37: #{tpu_custom_call.1} parent=0 // pred_fallthru
    _

</llo_original>
